<compile_context>
chip_gen: v7x
topology: tpu7x:2x2x1
jax: 0.10.0
libtpu: 0.0.40
codegen_flags: <defaults>
</compile_context>

<pallas_src>
import functools

import jax
import jax.numpy as jnp
from jax.experimental import pallas as pl
from jax.experimental.pallas import tpu as pltpu

LEAKY_SLOPE = 0.01  # PyTorch F.leaky_relu default


def _leaky_relu(x):
    # max(x, a*x) == leaky_relu(x) for 0 < a < 1; mul+max (2 VALU ops/elem)
    # instead of cmp+mul+select (3).
    return jnp.maximum(x, LEAKY_SLOPE * x)


def _entire_estimator_kernel(attr_ref, sptm_ref, w1a_ref, w1s_ref, b1_ref,
                             wres_ref, bres_ref, w2_ref, b2_ref, out_ref,
                             *, num_final_fcs):
    # attr_ref: [TB, A] (bf16)   sptm_ref: [TB, S] (bf16)
    # w1a_ref:  [A, H]  (bf16)   w1s_ref:  [S, H]  (bf16)   b1_ref: [1, H] f32
    # wres_ref: [F, H, H] (bf16) bres_ref: [F, 1, H] f32
    # w2_ref:   [1, H]  (bf16, row form)   b2_ref: [1, 1] f32 (SMEM scalar)
    # out_ref:  [1, TB] f32 (lane-dense: batch on lanes)

    # input2hid (split-w1 form, equivalent to concat(attr, sptm) @ w1) + leaky.
    # f32 accumulation via preferred_element_type; elementwise stays f32.
    hidden = jnp.dot(attr_ref[...], w1a_ref[...],
                     preferred_element_type=jnp.float32)
    hidden = hidden + jnp.dot(sptm_ref[...], w1s_ref[...],
                              preferred_element_type=jnp.float32)
    hidden = hidden + b1_ref[...]
    hidden = _leaky_relu(hidden)

    # residual stack: hidden = hidden + leaky_relu(hidden @ W_i + b_i)
    for i in range(num_final_fcs):
        res = jnp.dot(hidden.astype(wres_ref.dtype), wres_ref[i],
                      preferred_element_type=jnp.float32)
        res = res + bres_ref[i]
        hidden = hidden + _leaky_relu(res)

    # hid2out: contract over H with the batch dim landing on lanes -> [1, TB].
    out = jax.lax.dot_general(
        w2_ref[...], hidden.astype(w2_ref.dtype),
        dimension_numbers=(((1,), (1,)), ((), ())),
        preferred_element_type=jnp.float32)
    out = out + b2_ref[0, 0]
    out_ref[...] = out.astype(out_ref.dtype)


def _round_up(x, m):
    return ((x + m - 1) // m) * m


def _choose_batch_tile(B, block_b):
    if B < 256:
        return B  # full-batch tile (block == full dims is always legal)
    # At least 2 grid steps so ("parallel",) can shard the batch axis over both
    # v7x TensorCores; TB stays a multiple of 128 so the [1, TB] output stores
    # are lane-dense / unmasked and the [TB, *] inputs are sublane-aligned.
    return min(block_b, _round_up(pl.cdiv(B, 2), 128))


def entire_estimator_forward(attr_t, sptm_t, params, *, num_final_fcs,
                             block_b=512, matmul_dtype=jnp.bfloat16):
    """params = dict(w1, b1, wres, bres, w2, b2); weights stored [in, out]."""
    attr_t = jnp.asarray(attr_t)
    sptm_t = jnp.asarray(sptm_t)
    B, A = attr_t.shape
    _, S = sptm_t.shape
    w1 = jnp.asarray(params["w1"])           # [A+S, H]
    H = w1.shape[1]
    F = num_final_fcs
    mdt = jnp.dtype(matmul_dtype)

    # MXU operands (weights + streamed activations) in matmul_dtype (bf16 in
    # production). Biases stay f32 so all elementwise work is f32 (v5e has no
    # bf16 VPU); accumulation is f32 via preferred_element_type regardless.
    attr_t = attr_t.astype(mdt)
    sptm_t = sptm_t.astype(mdt)
    w1a = w1[:A].astype(mdt)                 # static split of the weight only
    w1s = w1[A:].astype(mdt)
    wres = jnp.asarray(params["wres"]).astype(mdt)          # [F, H, H]
    w2_row = jnp.asarray(params["w2"]).reshape(1, H).astype(mdt)
    b1 = jnp.asarray(params["b1"]).reshape(1, H).astype(jnp.float32)
    bres = jnp.asarray(params["bres"]).reshape(F, 1, H).astype(jnp.float32)
    b2 = jnp.asarray(params["b2"]).reshape(1, 1).astype(jnp.float32)

    TB = _choose_batch_tile(B, block_b)
    grid = (pl.cdiv(B, TB),)

    # VMEM budget: Buffered(1) resident weights (single copy) + double-buffered
    # activation tiles + ~6 [TB,H] f32/bf16 temporaries, with 1.5x headroom.
    def _nbytes(x):
        return x.size * x.dtype.itemsize
    resident = sum(_nbytes(a) for a in (w1a, w1s, b1, wres, bres, w2_row))
    streamed = 2 * (TB * (A + S) * mdt.itemsize + TB * 4)   # inputs + out row
    temps = 6 * TB * H * 4
    vmem_limit = int(min(max(1.5 * (resident + streamed + temps) + (2 << 20),
                             16 << 20), 64 << 20))

    flops = 2 * B * ((A + S) * H + F * H * H + H)
    bytes_accessed = int(B * (A + S) * mdt.itemsize + 4 * B + resident + 4)
    cost = pl.CostEstimate(flops=flops, transcendentals=0,
                           bytes_accessed=bytes_accessed)

    kernel = functools.partial(_entire_estimator_kernel, num_final_fcs=F)
    buf1 = pl.Buffered(1)   # resident blocks: no re-fetch -> no double buffer

    out_row = pl.pallas_call(
        kernel,
        out_shape=jax.ShapeDtypeStruct((1, B), jnp.float32),
        grid=grid,
        in_specs=[
            pl.BlockSpec((TB, A), lambda i: (i, 0)),        # attr tile (streamed)
            pl.BlockSpec((TB, S), lambda i: (i, 0)),        # sptm tile (streamed)
            pl.BlockSpec((A, H), lambda i: (0, 0), pipeline_mode=buf1),
            pl.BlockSpec((S, H), lambda i: (0, 0), pipeline_mode=buf1),
            pl.BlockSpec((1, H), lambda i: (0, 0), pipeline_mode=buf1),
            pl.BlockSpec((F, H, H), lambda i: (0, 0, 0), pipeline_mode=buf1),
            pl.BlockSpec((F, 1, H), lambda i: (0, 0, 0), pipeline_mode=buf1),
            pl.BlockSpec((1, H), lambda i: (0, 0), pipeline_mode=buf1),
            pl.BlockSpec(memory_space=pltpu.SMEM),          # b2 scalar in SMEM
        ],
        out_specs=pl.BlockSpec((1, TB), lambda i: (0, i)),  # lane-dense out
        compiler_params=pltpu.CompilerParams(
            dimension_semantics=("parallel",),
            vmem_limit_bytes=vmem_limit),
        cost_estimate=cost,
    )(attr_t, sptm_t, w1a, w1s, b1, wres, bres, w2_row, b2)

    # [1, B] lane-dense slab -> [B, 1] to match the PyTorch module's output.
    return out_row.reshape(B, 1)


def init_params(key, input_size, num_final_fcs, hidden_size):
    """Deterministic synthetic parameters (nn.Linear-shaped, stored
    pre-transposed as [in, out] for row-major matmul)."""
    ks = jax.random.split(key, 6)
    scale_in = 1.0 / jnp.sqrt(jnp.float32(input_size))
    scale_h = 1.0 / jnp.sqrt(jnp.float32(hidden_size))
    w1 = jax.random.uniform(ks[0], (input_size, hidden_size), jnp.float32,
                            -scale_in, scale_in)
    b1 = jax.random.uniform(ks[1], (1, hidden_size), jnp.float32,
                            -scale_in, scale_in)
    wres = jax.random.uniform(ks[2], (num_final_fcs, hidden_size, hidden_size),
                              jnp.float32, -scale_h, scale_h)
    bres = jax.random.uniform(ks[3], (num_final_fcs, 1, hidden_size),
                              jnp.float32, -scale_h, scale_h)
    w2 = jax.random.uniform(ks[4], (hidden_size, 1), jnp.float32,
                            -scale_h, scale_h)
    b2 = jax.random.uniform(ks[5], (1, 1), jnp.float32, -scale_h, scale_h)
    return dict(w1=w1, b1=b1, wres=wres, bres=bres, w2=w2, b2=b2)


def reference_forward(attr_t, sptm_t, params, *, num_final_fcs):
    """Pure-JAX f32 reference mirroring the PyTorch module."""
    def leaky(x):
        return jnp.where(x >= 0, x, LEAKY_SLOPE * x)
    x = jnp.concatenate([attr_t, sptm_t], axis=1).astype(jnp.float32)
    hidden = leaky(x @ params["w1"] + params["b1"])
    for i in range(num_final_fcs):
        residual = leaky(hidden @ params["wres"][i] + params["bres"][i])
        hidden = hidden + residual
    return hidden @ params["w2"] + params["b2"]


if __name__ == "__main__":
    # Small shapes consistent with the module's forward:
    #   attr_t: [B, A], sptm_t: [B, S]  ->  input_size = A + S
    B, A, S = 8, 16, 16
    input_size = A + S
    num_final_fcs = 3
    hidden_size = 32

    key = jax.random.PRNGKey(0)
    k_attr, k_sptm, k_param = jax.random.split(key, 3)
    attr_t = jax.random.normal(k_attr, (B, A), jnp.float32)
    sptm_t = jax.random.normal(k_sptm, (B, S), jnp.float32)
    params = init_params(k_param, input_size, num_final_fcs, hidden_size)

    ref = reference_forward(attr_t, sptm_t, params,
                            num_final_fcs=num_final_fcs)

    # 1) Strict logic check: f32 matmul operands -> must match the reference.
    out_f32 = entire_estimator_forward(attr_t, sptm_t, params,
                                       num_final_fcs=num_final_fcs,
                                       matmul_dtype=jnp.float32)
    out_f32 = jax.block_until_ready(out_f32)
    assert out_f32.shape == (B, 1)
    assert jnp.allclose(out_f32, ref, atol=1e-5, rtol=1e-5)

    # 2) Production path: bf16 MXU operands, f32 accumulation + elementwise.
    out_bf16 = entire_estimator_forward(attr_t, sptm_t, params,
                                        num_final_fcs=num_final_fcs)
    out_bf16 = jax.block_until_ready(out_bf16)
    assert out_bf16.shape == (B, 1)
    assert jnp.allclose(out_bf16, ref, atol=5e-2, rtol=5e-2)

    print("KERNEL_OK")
</pallas_src>

<mosaic_0001>
module attributes {stable_mosaic.version = 11 : i64} {
  func.func @_entire_estimator_kernel(%arg0: i32, %arg1: memref<8x16xf32, #tpu.memory_space<vmem>>, %arg2: memref<8x16xf32, #tpu.memory_space<vmem>>, %arg3: memref<16x32xf32, #tpu.memory_space<vmem>>, %arg4: memref<16x32xf32, #tpu.memory_space<vmem>>, %arg5: memref<1x32xf32, #tpu.memory_space<vmem>>, %arg6: memref<3x32x32xf32, #tpu.memory_space<vmem>>, %arg7: memref<3x1x32xf32, #tpu.memory_space<vmem>>, %arg8: memref<1x32xf32, #tpu.memory_space<vmem>>, %arg9: memref<1x1xf32, #tpu.memory_space<smem>>, %arg10: memref<1x8xf32, #tpu.memory_space<vmem>>) attributes {dimension_semantics = [#tpu.dimension_semantics<parallel>], iteration_bounds = array<i64: 1>, scalar_prefetch = 0 : i64, scratch_operands = 0 : i64, tpu.core_type = #tpu.core_type<tc>, window_params = [{transform_indices = @transform_0, window_bounds = array<i64: 8, 16>}, {transform_indices = @transform_1, window_bounds = array<i64: 8, 16>}, {pipeline_mode = #tpu.pipeline_mode<synchronous>, transform_indices = @transform_2, window_bounds = array<i64: 16, 32>}, {pipeline_mode = #tpu.pipeline_mode<synchronous>, transform_indices = @transform_3, window_bounds = array<i64: 16, 32>}, {pipeline_mode = #tpu.pipeline_mode<synchronous>, transform_indices = @transform_4, window_bounds = array<i64: 1, 32>}, {pipeline_mode = #tpu.pipeline_mode<synchronous>, transform_indices = @transform_5, window_bounds = array<i64: 3, 32, 32>}, {pipeline_mode = #tpu.pipeline_mode<synchronous>, transform_indices = @transform_6, window_bounds = array<i64: 3, 1, 32>}, {pipeline_mode = #tpu.pipeline_mode<synchronous>, transform_indices = @transform_7, window_bounds = array<i64: 1, 32>}, {transform_indices = @transform_8, window_bounds = array<i64: 1, 1>}, {transform_indices = @transform_9, window_bounds = array<i64: 1, 8>}]} {
    %c0 = arith.constant 0 : index
    %c0_0 = arith.constant 0 : index
    %0 = vector.load %arg1[%c0, %c0_0] : memref<8x16xf32, #tpu.memory_space<vmem>>, vector<8x16xf32>
    %c0_1 = arith.constant 0 : index
    %c0_2 = arith.constant 0 : index
    %1 = vector.load %arg3[%c0_1, %c0_2] : memref<16x32xf32, #tpu.memory_space<vmem>>, vector<16x32xf32>
    %cst = arith.constant dense<0.000000e+00> : vector<8x32xf32>
    %2 = tpu.matmul %0, %1, %cst {dimension_numbers = #tpu.dot_dimension_numbers<[1], [0], [0], [1], [0, 0, 1, 1], [], []>} : vector<8x16xf32>, vector<16x32xf32>, vector<8x32xf32> -> vector<8x32xf32>
    %c0_3 = arith.constant 0 : index
    %c0_4 = arith.constant 0 : index
    %3 = vector.load %arg2[%c0_3, %c0_4] : memref<8x16xf32, #tpu.memory_space<vmem>>, vector<8x16xf32>
    %c0_5 = arith.constant 0 : index
    %c0_6 = arith.constant 0 : index
    %4 = vector.load %arg4[%c0_5, %c0_6] : memref<16x32xf32, #tpu.memory_space<vmem>>, vector<16x32xf32>
    %cst_7 = arith.constant dense<0.000000e+00> : vector<8x32xf32>
    %5 = tpu.matmul %3, %4, %cst_7 {dimension_numbers = #tpu.dot_dimension_numbers<[1], [0], [0], [1], [0, 0, 1, 1], [], []>} : vector<8x16xf32>, vector<16x32xf32>, vector<8x32xf32> -> vector<8x32xf32>
    %6 = arith.addf %2, %5 : vector<8x32xf32>
    %c0_8 = arith.constant 0 : index
    %c0_9 = arith.constant 0 : index
    %7 = vector.load %arg5[%c0_8, %c0_9] : memref<1x32xf32, #tpu.memory_space<vmem>>, vector<1x32xf32>
    %8 = vector.broadcast %7 : vector<1x32xf32> to vector<8x32xf32>
    %9 = arith.addf %6, %8 : vector<8x32xf32>
    %cst_10 = arith.constant 0.00999999977 : f32
    %10 = vector.broadcast %cst_10 : f32 to vector<8x32xf32>
    %11 = arith.mulf %10, %9 : vector<8x32xf32>
    %12 = arith.maximumf %9, %11 : vector<8x32xf32>
    %c0_11 = arith.constant 0 : index
    %c0_12 = arith.constant 0 : index
    %c0_13 = arith.constant 0 : index
    %13 = vector.load %arg6[%c0_11, %c0_12, %c0_13] : memref<3x32x32xf32, #tpu.memory_space<vmem>>, vector<1x32x32xf32>
    %14 = vector.shape_cast %13 : vector<1x32x32xf32> to vector<32x32xf32>
    %cst_14 = arith.constant dense<0.000000e+00> : vector<8x32xf32>
    %15 = tpu.matmul %12, %14, %cst_14 {dimension_numbers = #tpu.dot_dimension_numbers<[1], [0], [0], [1], [0, 0, 1, 1], [], []>} : vector<8x32xf32>, vector<32x32xf32>, vector<8x32xf32> -> vector<8x32xf32>
    %c0_15 = arith.constant 0 : index
    %c0_16 = arith.constant 0 : index
    %c0_17 = arith.constant 0 : index
    %16 = vector.load %arg7[%c0_15, %c0_16, %c0_17] : memref<3x1x32xf32, #tpu.memory_space<vmem>>, vector<1x1x32xf32>
    %17 = vector.shape_cast %16 : vector<1x1x32xf32> to vector<1x32xf32>
    %18 = vector.broadcast %17 : vector<1x32xf32> to vector<8x32xf32>
    %19 = arith.addf %15, %18 : vector<8x32xf32>
    %cst_18 = arith.constant 0.00999999977 : f32
    %20 = vector.broadcast %cst_18 : f32 to vector<8x32xf32>
    %21 = arith.mulf %20, %19 : vector<8x32xf32>
    %22 = arith.maximumf %19, %21 : vector<8x32xf32>
    %23 = arith.addf %12, %22 : vector<8x32xf32>
    %c1 = arith.constant 1 : index
    %c0_19 = arith.constant 0 : index
    %c0_20 = arith.constant 0 : index
    %24 = vector.load %arg6[%c1, %c0_19, %c0_20] : memref<3x32x32xf32, #tpu.memory_space<vmem>>, vector<1x32x32xf32>
    %25 = vector.shape_cast %24 : vector<1x32x32xf32> to vector<32x32xf32>
    %cst_21 = arith.constant dense<0.000000e+00> : vector<8x32xf32>
    %26 = tpu.matmul %23, %25, %cst_21 {dimension_numbers = #tpu.dot_dimension_numbers<[1], [0], [0], [1], [0, 0, 1, 1], [], []>} : vector<8x32xf32>, vector<32x32xf32>, vector<8x32xf32> -> vector<8x32xf32>
    %c1_22 = arith.constant 1 : index
    %c0_23 = arith.constant 0 : index
    %c0_24 = arith.constant 0 : index
    %27 = vector.load %arg7[%c1_22, %c0_23, %c0_24] : memref<3x1x32xf32, #tpu.memory_space<vmem>>, vector<1x1x32xf32>
    %28 = vector.shape_cast %27 : vector<1x1x32xf32> to vector<1x32xf32>
    %29 = vector.broadcast %28 : vector<1x32xf32> to vector<8x32xf32>
    %30 = arith.addf %26, %29 : vector<8x32xf32>
    %cst_25 = arith.constant 0.00999999977 : f32
    %31 = vector.broadcast %cst_25 : f32 to vector<8x32xf32>
    %32 = arith.mulf %31, %30 : vector<8x32xf32>
    %33 = arith.maximumf %30, %32 : vector<8x32xf32>
    %34 = arith.addf %23, %33 : vector<8x32xf32>
    %c2 = arith.constant 2 : index
    %c0_26 = arith.constant 0 : index
    %c0_27 = arith.constant 0 : index
    %35 = vector.load %arg6[%c2, %c0_26, %c0_27] : memref<3x32x32xf32, #tpu.memory_space<vmem>>, vector<1x32x32xf32>
    %36 = vector.shape_cast %35 : vector<1x32x32xf32> to vector<32x32xf32>
    %cst_28 = arith.constant dense<0.000000e+00> : vector<8x32xf32>
    %37 = tpu.matmul %34, %36, %cst_28 {dimension_numbers = #tpu.dot_dimension_numbers<[1], [0], [0], [1], [0, 0, 1, 1], [], []>} : vector<8x32xf32>, vector<32x32xf32>, vector<8x32xf32> -> vector<8x32xf32>
    %c2_29 = arith.constant 2 : index
    %c0_30 = arith.constant 0 : index
    %c0_31 = arith.constant 0 : index
    %38 = vector.load %arg7[%c2_29, %c0_30, %c0_31] : memref<3x1x32xf32, #tpu.memory_space<vmem>>, vector<1x1x32xf32>
    %39 = vector.shape_cast %38 : vector<1x1x32xf32> to vector<1x32xf32>
    %40 = vector.broadcast %39 : vector<1x32xf32> to vector<8x32xf32>
    %41 = arith.addf %37, %40 : vector<8x32xf32>
    %cst_32 = arith.constant 0.00999999977 : f32
    %42 = vector.broadcast %cst_32 : f32 to vector<8x32xf32>
    %43 = arith.mulf %42, %41 : vector<8x32xf32>
    %44 = arith.maximumf %41, %43 : vector<8x32xf32>
    %45 = arith.addf %34, %44 : vector<8x32xf32>
    %c0_33 = arith.constant 0 : index
    %c0_34 = arith.constant 0 : index
    %46 = vector.load %arg8[%c0_33, %c0_34] : memref<1x32xf32, #tpu.memory_space<vmem>>, vector<1x32xf32>
    %cst_35 = arith.constant dense<0.000000e+00> : vector<1x8xf32>
    %47 = tpu.matmul %46, %45, %cst_35 {dimension_numbers = #tpu.dot_dimension_numbers<[1], [1], [0], [0], [0, 0, 1, 0], [], []>} : vector<1x32xf32>, vector<8x32xf32>, vector<1x8xf32> -> vector<1x8xf32>
    %c0_36 = arith.constant 0 : index
    %c0_37 = arith.constant 0 : index
    %48 = memref.load %arg9[%c0_36, %c0_37] : memref<1x1xf32, #tpu.memory_space<smem>>
    %49 = vector.broadcast %48 : f32 to vector<1x8xf32>
    %50 = arith.addf %47, %49 : vector<1x8xf32>
    %c0_38 = arith.constant 0 : index
    %c0_39 = arith.constant 0 : index
    %51 = vector.load %arg10[%c0_38, %c0_39] : memref<1x8xf32, #tpu.memory_space<vmem>>, vector<1x8xf32>
    tpu.vector_store %arg10[%c0_38, %c0_39], %50 {strides = array<i32>} : memref<1x8xf32, #tpu.memory_space<vmem>>, vector<1x8xf32>,
    return
  }
  func.func @transform_0(%arg0: i32) -> (i32, i32) {
    %c0_i32 = arith.constant 0 : i32
    %c0_i32_0 = arith.constant 0 : i32
    return %arg0, %c0_i32 : i32, i32
  }
  func.func @transform_1(%arg0: i32) -> (i32, i32) {
    %c0_i32 = arith.constant 0 : i32
    %c0_i32_0 = arith.constant 0 : i32
    return %arg0, %c0_i32 : i32, i32
  }
  func.func @transform_2(%arg0: i32) -> (i32, i32) {
    %c0_i32 = arith.constant 0 : i32
    %c0_i32_0 = arith.constant 0 : i32
    %c0_i32_1 = arith.constant 0 : i32
    return %c0_i32, %c0_i32_0 : i32, i32
  }
  func.func @transform_3(%arg0: i32) -> (i32, i32) {
    %c0_i32 = arith.constant 0 : i32
    %c0_i32_0 = arith.constant 0 : i32
    %c0_i32_1 = arith.constant 0 : i32
    return %c0_i32, %c0_i32_0 : i32, i32
  }
  func.func @transform_4(%arg0: i32) -> (i32, i32) {
    %c0_i32 = arith.constant 0 : i32
    %c0_i32_0 = arith.constant 0 : i32
    %c0_i32_1 = arith.constant 0 : i32
    return %c0_i32, %c0_i32_0 : i32, i32
  }
  func.func @transform_5(%arg0: i32) -> (i32, i32, i32) {
    %c0_i32 = arith.constant 0 : i32
    %c0_i32_0 = arith.constant 0 : i32
    %c0_i32_1 = arith.constant 0 : i32
    %c0_i32_2 = arith.constant 0 : i32
    return %c0_i32, %c0_i32_0, %c0_i32_1 : i32, i32, i32
  }
  func.func @transform_6(%arg0: i32) -> (i32, i32, i32) {
    %c0_i32 = arith.constant 0 : i32
    %c0_i32_0 = arith.constant 0 : i32
    %c0_i32_1 = arith.constant 0 : i32
    %c0_i32_2 = arith.constant 0 : i32
    return %c0_i32, %c0_i32_0, %c0_i32_1 : i32, i32, i32
  }
  func.func @transform_7(%arg0: i32) -> (i32, i32) {
    %c0_i32 = arith.constant 0 : i32
    %c0_i32_0 = arith.constant 0 : i32
    %c0_i32_1 = arith.constant 0 : i32
    return %c0_i32, %c0_i32_0 : i32, i32
  }
  func.func @transform_8(%arg0: i32) -> (i32, i32) {
    %c0_i32 = arith.constant 0 : i32
    %c0_i32_0 = arith.constant 0 : i32
    %c0_i32_1 = arith.constant 0 : i32
    return %c0_i32, %c0_i32_0 : i32, i32
  }
  func.func @transform_9(%arg0: i32) -> (i32, i32) {
    %c0_i32 = arith.constant 0 : i32
    %c0_i32_0 = arith.constant 0 : i32
    return %c0_i32, %arg0 : i32, i32
  }
}

</mosaic_0001>

<llo_original>
// kernel: tpu_custom_call.1
$region0: #{tpu_custom_call.1}
  #allocation0 [shape = 'u32[]', space=smem, size = 0x4, offset = 0x4, fixed_abs, tag = 'smem constant byte address 0x4 - core index']
  #allocation1 [shape = 'u32[144,128]{1,0:T(1,128)}', space=vmem, size = 0x12000, scoped, tag = 'internal scratch']
  #allocation2 [shape = 'f32[1,1]{1,0:T(1,128)S(6)}', space=smem, size = 0x200, scoped, tag = 'scoped memory for tpu_custom_call.1']
  %s0 = inlined_call_operand.hbm [shape: f32[8,16], index: 0, kind: input, shape index: {}]
  %s1 = inlined_call_operand.hbm [shape: f32[8,16], index: 1, kind: input, shape index: {}]
  %s2 = inlined_call_operand.hbm [shape: f32[16,32], index: 2, kind: input, shape index: {}]
  %s3 = inlined_call_operand.hbm [shape: f32[16,32], index: 3, kind: input, shape index: {}]
  %s4 = inlined_call_operand.vmem [shape: f32[1,32], index: 4, kind: input, shape index: {}]
  %s5 = inlined_call_operand.hbm [shape: f32[3,32,32], index: 5, kind: input, shape index: {}]
  %s6 = inlined_call_operand.vmem [shape: f32[3,1,32], index: 6, kind: input, shape index: {}]
  %s7 = inlined_call_operand.vmem [shape: f32[1,32], index: 7, kind: input, shape index: {}]
  %s8 = inlined_call_operand.<no memory space> [shape: f32[1,1], index: 8, kind: input, shape index: {}]
  %s9 = inlined_call_operand.hbm [shape: f32[1,8], index: 9, kind: output, shape index: {}]
  %s10 = sld [smem:[#allocation0]]
  $region66: #{tpu_custom_call.1} parent=0
    _
  %s12 = ssub.s32 1, %s10
  %s13 = scalar_select 0, %s12, %s10
  %14 = sst [smem:[#allocation2]] %s8
  $region1: #{tpu_custom_call.1} parent=0
    #allocation3 [shape = 'u8[4096]{0}', space=vmem, size = 0x1000, scoped, tag = 'input window, operand 0, single buffered']
    #allocation4 [shape = 's32[1]{0}', space=sflag, size = 0x4, scoped, tag = 'scoped memory for tpu_custom_call.1']
    #allocation5 [shape = 's32[1]{0}', space=sflag, size = 0x4, scoped, tag = 'scoped memory for tpu_custom_call.1']
    #allocation6 [shape = 'u8[4096]{0}', space=vmem, size = 0x1000, scoped, tag = 'input window, operand 1, single buffered']
    #allocation7 [shape = 's32[1]{0}', space=sflag, size = 0x4, scoped, tag = 'scoped memory for tpu_custom_call.1']
    #allocation8 [shape = 'u8[8192]{0}', space=vmem, size = 0x2000, scoped, tag = 'input window, operand 2, single buffered']
    #allocation9 [shape = 'u8[8192]{0}', space=vmem, size = 0x2000, scoped, tag = 'input window, operand 3, single buffered']
    #allocation10 [shape = 's32[1]{0}', space=sflag, size = 0x4, scoped, tag = 'scoped memory for tpu_custom_call.1']
    #allocation11 [shape = 'u8[49152]{0}', space=vmem, size = 0xc000, scoped, tag = 'input window, operand 5, single buffered']
    #allocation12 [shape = 'u8[512]{0}', space=vmem, size = 0x400, scoped, tag = 'output window, operand 0, single buffered']
    %15 = vsyncpa [#allocation4], 0
    %16 = vsyncpa [#allocation7], 0
    %17 = vsyncpa [#allocation10], 0
    %18 = vsyncpa [#allocation5], 0
    // Predicated region
    $region2: #{tpu_custom_call.1} parent=1 // pred_check
      _
    $region3: #{tpu_custom_call.1} parent=1 // pred_check_branch
      %20 = sbr.rel (0) target = $region5
    $region4: #{tpu_custom_call.1} parent=1 // pred_region
      %s22 = ssub.s32 128, 128
      %23 = vsyncadd [#allocation4], %s22
      %s25 = sshll.u32 [#allocation3], 4
      %s26 = int_to_ptr.vmem [resolvable:$true] %s25
      %28 = dma.hbm_to_vmem [thread:$0]  %s0, 128, %s26, [#allocation4]
    $region5: #{tpu_custom_call.1} parent=1 // pred_fallthru
      _
    // Predicated region
    $region6: #{tpu_custom_call.1} parent=1 // pred_check
      _
    $region7: #{tpu_custom_call.1} parent=1 // pred_check_branch
      %30 = sbr.rel (0) target = $region9
    $region8: #{tpu_custom_call.1} parent=1 // pred_region
      %s32 = ssub.s32 128, 128
      %33 = vsyncadd [#allocation7], %s32
      %s35 = sshll.u32 [#allocation6], 4
      %s36 = int_to_ptr.vmem [resolvable:$true] %s35
      %38 = dma.hbm_to_vmem [thread:$0]  %s1, 128, %s36, [#allocation7]
    $region9: #{tpu_custom_call.1} parent=1 // pred_fallthru
      _
    // Predicated region
    $region10: #{tpu_custom_call.1} parent=1 // pred_check
      _
    $region11: #{tpu_custom_call.1} parent=1 // pred_check_branch
      %40 = sbr.rel (0) target = $region13
    $region12: #{tpu_custom_call.1} parent=1 // pred_region
      %s42 = ssub.s32 256, 256
      %43 = vsyncadd [#allocation7], %s42
      %s44 = sshll.u32 [#allocation8], 4
      %s45 = int_to_ptr.vmem [resolvable:$true] %s44
      %50 = dma.hbm_to_vmem [thread:$0]  %s2, 256, %s45, [#allocation7], 128, 128, 8
    $region13: #{tpu_custom_call.1} parent=1 // pred_fallthru
      _
    // Predicated region
    $region14: #{tpu_custom_call.1} parent=1 // pred_check
      _
    $region15: #{tpu_custom_call.1} parent=1 // pred_check_branch
      %52 = sbr.rel (0) target = $region17
    $region16: #{tpu_custom_call.1} parent=1 // pred_region
      %s54 = ssub.s32 256, 256
      %55 = vsyncadd [#allocation10], %s54
      %s56 = sshll.u32 [#allocation9], 4
      %s57 = int_to_ptr.vmem [resolvable:$true] %s56
      %62 = dma.hbm_to_vmem [thread:$0]  %s3, 256, %s57, [#allocation10], 128, 128, 8
    $region17: #{tpu_custom_call.1} parent=1 // pred_fallthru
      _
    // Predicated region
    $region18: #{tpu_custom_call.1} parent=1 // pred_check
      _
    $region19: #{tpu_custom_call.1} parent=1 // pred_check_branch
      %64 = sbr.rel (0) target = $region21
    $region20: #{tpu_custom_call.1} parent=1 // pred_region
      _
    $region21: #{tpu_custom_call.1} parent=1 // pred_fallthru
      _
    // Predicated region
    $region22: #{tpu_custom_call.1} parent=1 // pred_check
      _
    $region23: #{tpu_custom_call.1} parent=1 // pred_check_branch
      %66 = sbr.rel (0) target = $region25
    $region24: #{tpu_custom_call.1} parent=1 // pred_region
      %s68 = ssub.s32 1536, 1536
      %69 = vsyncadd [#allocation10], %s68
      %s70 = sshll.u32 [#allocation11], 4
      %s71 = int_to_ptr.vmem [resolvable:$true] %s70
      %76 = dma.hbm_to_vmem [thread:$0]  %s5, 1536, %s71, [#allocation10], 128, 128, 8
    $region25: #{tpu_custom_call.1} parent=1 // pred_fallthru
      _
    // Predicated region
    $region26: #{tpu_custom_call.1} parent=1 // pred_check
      _
    $region27: #{tpu_custom_call.1} parent=1 // pred_check_branch
      %78 = sbr.rel (0) target = $region29
    $region28: #{tpu_custom_call.1} parent=1 // pred_region
      _
    $region29: #{tpu_custom_call.1} parent=1 // pred_fallthru
      _
    // Predicated region
    $region30: #{tpu_custom_call.1} parent=1 // pred_check
      _
    $region31: #{tpu_custom_call.1} parent=1 // pred_check_branch
      %80 = sbr.rel (0) target = $region33
    $region32: #{tpu_custom_call.1} parent=1 // pred_region
      _
    $region33: #{tpu_custom_call.1} parent=1 // pred_fallthru
      _
    // Predicated region
    $region34: #{tpu_custom_call.1} parent=1 // pred_check
      _
    $region35: #{tpu_custom_call.1} parent=1 // pred_check_branch
      %82 = sbr.rel (0) target = $region37
    $region36: #{tpu_custom_call.1} parent=1 // pred_region
      _
    $region37: #{tpu_custom_call.1} parent=1 // pred_fallthru
      _
    // Predicated region
    $region38: #{tpu_custom_call.1} parent=1 // pred_check
      _
    $region39: #{tpu_custom_call.1} parent=1 // pred_check_branch
      %84 = sbr.rel (0) target = $region41
    $region40: #{tpu_custom_call.1} parent=1 // pred_region
      %85 = dma.done [#allocation4], 128
    $region41: #{tpu_custom_call.1} parent=1 // pred_fallthru
      _
    // Predicated region
    $region42: #{tpu_custom_call.1} parent=1 // pred_check
      _
    $region43: #{tpu_custom_call.1} parent=1 // pred_check_branch
      %87 = sbr.rel (0) target = $region45
    $region44: #{tpu_custom_call.1} parent=1 // pred_region
      %88 = dma.done [#allocation7], 128
    $region45: #{tpu_custom_call.1} parent=1 // pred_fallthru
      _
    // Predicated region
    $region46: #{tpu_custom_call.1} parent=1 // pred_check
      _
    $region47: #{tpu_custom_call.1} parent=1 // pred_check_branch
      %90 = sbr.rel (0) target = $region49
    $region48: #{tpu_custom_call.1} parent=1 // pred_region
      %91 = dma.done [#allocation7], 256
    $region49: #{tpu_custom_call.1} parent=1 // pred_fallthru
      _
    // Predicated region
    $region50: #{tpu_custom_call.1} parent=1 // pred_check
      _
    $region51: #{tpu_custom_call.1} parent=1 // pred_check_branch
      %93 = sbr.rel (0) target = $region53
    $region52: #{tpu_custom_call.1} parent=1 // pred_region
      %94 = dma.done [#allocation10], 256
    $region53: #{tpu_custom_call.1} parent=1 // pred_fallthru
      _
    // Predicated region
    $region54: #{tpu_custom_call.1} parent=1 // pred_check
      _
    $region55: #{tpu_custom_call.1} parent=1 // pred_check_branch
      %96 = sbr.rel (0) target = $region57
    $region56: #{tpu_custom_call.1} parent=1 // pred_region
      %97 = dma.done [#allocation10], 1536
    $region57: #{tpu_custom_call.1} parent=1 // pred_fallthru
      _
    %v98 = vld [vmem:[#allocation3] sm:$0xff]
    %v99 = vld [vmem:[#allocation8] sm:$0xff]
    %v100 = vld [vmem:[#allocation8 + $0x8] sm:$0xff]
    %v101 = vld [vmem:[#allocation6] sm:$0xff]
    %v102 = vld [vmem:[#allocation9] sm:$0xff]
    %v103 = vld [vmem:[#allocation9 + $0x8] sm:$0xff]
    %vm104 = vcmask 130048
    %v106 = vsel %vm104, %v101, 0
    %108 = vmatprep.subr.mxu0 0.0
    %109 = vmatpush1.msra.mxu0 %v102
    %110 = vmatprep.subr.mxu0 0.0
    %111 = vmatpush1.msra.mxu0 %v103
    %112 = vmatprep.subr.mxu0 0.0
    %113 = vmatpush1.msra.mxu0 0.0
    %114 = vmatprep.subr.mxu0 0.0
    %115 = vmatpush1.msra.mxu0 0.0
    %116 = vmatprep.subr.mxu0 0.0
    %117 = vmatpush1.msra.mxu0 0.0
    %118 = vmatprep.subr.mxu0 0.0
    %119 = vmatpush1.msra.mxu0 0.0
    %120 = vmatprep.subr.mxu0 0.0
    %121 = vmatpush1.msra.mxu0 0.0
    %122 = vmatprep.subr.mxu0 0.0
    %123 = vmatpush1.msra.mxu0 0.0
    %124 = vmatprep.subr.mxu0 0.0
    %125 = vmatpush1.msra.mxu0 0.0
    %126 = vmatprep.subr.mxu0 0.0
    %127 = vmatpush1.msra.mxu0 0.0
    %128 = vmatprep.subr.mxu0 0.0
    %129 = vmatpush1.msra.mxu0 0.0
    %130 = vmatprep.subr.mxu0 0.0
    %131 = vmatpush1.msra.mxu0 0.0
    %132 = vmatprep.subr.mxu0 0.0
    %133 = vmatpush1.msra.mxu0 0.0
    %134 = vmatprep.subr.mxu0 0.0
    %135 = vmatpush1.msra.mxu0 0.0
    %136 = vmatprep.subr.mxu0 0.0
    %137 = vmatpush1.msra.mxu0 0.0
    %138 = vmatprep.subr.mxu0 0.0
    %139 = vmatpush1.msra.mxu0 0.0
    %140 = vmatprep.subr.mxu0 0.0
    %141 = vmatpush1.msra.mxu0 0.0
    %142 = vmatprep.subr.mxu0 0.0
    %143 = vmatpush1.msra.mxu0 0.0
    %144 = vmatprep.subr.mxu0 0.0
    %145 = vmatpush1.msra.mxu0 0.0
    %146 = vmatprep.subr.mxu0 0.0
    %147 = vmatpush1.msra.mxu0 0.0
    %148 = vmatprep.subr.mxu0 0.0
    %149 = vmatpush1.msra.mxu0 0.0
    %150 = vmatprep.subr.mxu0 0.0
    %151 = vmatpush1.msra.mxu0 0.0
    %152 = vmatprep.subr.mxu0 0.0
    %153 = vmatpush1.msra.mxu0 0.0
    %154 = vmatprep.subr.mxu0 0.0
    %155 = vmatpush1.msra.mxu0 0.0
    %156 = vmatprep.subr.mxu0 0.0
    %157 = vmatpush1.msra.mxu0 0.0
    %158 = vmatprep.subr.mxu0 0.0
    %159 = vmatpush1.msra.mxu0 0.0
    %160 = vmatprep.subr.mxu0 0.0
    %161 = vmatpush1.msra.mxu0 0.0
    %162 = vmatprep.subr.mxu0 0.0
    %163 = vmatpush1.msra.mxu0 0.0
    %164 = vmatprep.subr.mxu0 0.0
    %165 = vmatpush1.msra.mxu0 0.0
    %166 = vmatprep.subr.mxu0 0.0
    %167 = vmatpush1.msra.mxu0 0.0
    %168 = vmatprep.subr.mxu0 0.0
    %169 = vmatpush1.msra.mxu0 0.0
    %170 = vmatprep.subr.mxu0 0.0
    %171 = vmatpush1.msra.mxu0 0.0
    %172 = vmatprep.mubr.f32.mxu0 0.0
    %173 = vmatmul.mubr.f32.gmra.mrb[0].mxu0 %v106
    %v174 = vpop.f32.mrb[0].mxu0
    %v175 = vadd.f32 0.0, %v174
    %v176 = vpop.f32.mrb[0].mxu0
    %177 = vdwg.mxu0
    %v179 = vsel %vm104, %v98, 0
    %181 = vmatprep.subr.mxu0 0.0
    %182 = vmatpush1.msra.mxu0 %v99
    %183 = vmatprep.subr.mxu0 0.0
    %184 = vmatpush1.msra.mxu0 %v100
    %185 = vmatprep.subr.mxu0 0.0
    %186 = vmatpush1.msra.mxu0 0.0
    %187 = vmatprep.subr.mxu0 0.0
    %188 = vmatpush1.msra.mxu0 0.0
    %189 = vmatprep.subr.mxu0 0.0
    %190 = vmatpush1.msra.mxu0 0.0
    %191 = vmatprep.subr.mxu0 0.0
    %192 = vmatpush1.msra.mxu0 0.0
    %193 = vmatprep.subr.mxu0 0.0
    %194 = vmatpush1.msra.mxu0 0.0
    %195 = vmatprep.subr.mxu0 0.0
    %196 = vmatpush1.msra.mxu0 0.0
    %197 = vmatprep.subr.mxu0 0.0
    %198 = vmatpush1.msra.mxu0 0.0
    %199 = vmatprep.subr.mxu0 0.0
    %200 = vmatpush1.msra.mxu0 0.0
    %201 = vmatprep.subr.mxu0 0.0
    %202 = vmatpush1.msra.mxu0 0.0
    %203 = vmatprep.subr.mxu0 0.0
    %204 = vmatpush1.msra.mxu0 0.0
    %205 = vmatprep.subr.mxu0 0.0
    %206 = vmatpush1.msra.mxu0 0.0
    %207 = vmatprep.subr.mxu0 0.0
    %208 = vmatpush1.msra.mxu0 0.0
    %209 = vmatprep.subr.mxu0 0.0
    %210 = vmatpush1.msra.mxu0 0.0
    %211 = vmatprep.subr.mxu0 0.0
    %212 = vmatpush1.msra.mxu0 0.0
    %213 = vmatprep.subr.mxu0 0.0
    %214 = vmatpush1.msra.mxu0 0.0
    %215 = vmatprep.subr.mxu0 0.0
    %216 = vmatpush1.msra.mxu0 0.0
    %217 = vmatprep.subr.mxu0 0.0
    %218 = vmatpush1.msra.mxu0 0.0
    %219 = vmatprep.subr.mxu0 0.0
    %220 = vmatpush1.msra.mxu0 0.0
    %221 = vmatprep.subr.mxu0 0.0
    %222 = vmatpush1.msra.mxu0 0.0
    %223 = vmatprep.subr.mxu0 0.0
    %224 = vmatpush1.msra.mxu0 0.0
    %225 = vmatprep.subr.mxu0 0.0
    %226 = vmatpush1.msra.mxu0 0.0
    %227 = vmatprep.subr.mxu0 0.0
    %228 = vmatpush1.msra.mxu0 0.0
    %229 = vmatprep.subr.mxu0 0.0
    %230 = vmatpush1.msra.mxu0 0.0
    %231 = vmatprep.subr.mxu0 0.0
    %232 = vmatpush1.msra.mxu0 0.0
    %233 = vmatprep.subr.mxu0 0.0
    %234 = vmatpush1.msra.mxu0 0.0
    %235 = vmatprep.subr.mxu0 0.0
    %236 = vmatpush1.msra.mxu0 0.0
    %237 = vmatprep.subr.mxu0 0.0
    %238 = vmatpush1.msra.mxu0 0.0
    %239 = vmatprep.subr.mxu0 0.0
    %240 = vmatpush1.msra.mxu0 0.0
    %241 = vmatprep.subr.mxu0 0.0
    %242 = vmatpush1.msra.mxu0 0.0
    %243 = vmatprep.subr.mxu0 0.0
    %244 = vmatpush1.msra.mxu0 0.0
    %245 = vmatprep.mubr.f32.mxu0 0.0
    %246 = vmatmul.mubr.f32.gmra.mrb[0].mxu0 %v179
    %v247 = vpop.f32.mrb[0].mxu0
    %v248 = vadd.f32 %v175, %v247
    %v249 = vpop.f32.mrb[0].mxu0
    %250 = vdwg.mxu0
    %v251 = vld [vmem:[%s4] sm:$0x1]
    %v253 = vlaneseq
    %v254 = vshrl.u32 %v253, 7
    %v255 = vsub.s32 0, %v254
    %v256 = vrot.slane %v251, %v255
    %v258 = vadd.f32 %v248, %v256
    %v259 = vmul.f32 %v258, 0.01
    %v260 = vmax.f32 %v258, %v259
    %v261 = vld [vmem:[#allocation11] sm:$0xff]
    %v262 = vld [vmem:[#allocation11 + $0x8] sm:$0xff]
    %v263 = vld [vmem:[#allocation11 + $0x10] sm:$0xff]
    %v264 = vld [vmem:[#allocation11 + $0x18] sm:$0xff]
    %v265 = vld [vmem:[%s6] sm:$0x1]
    %v267 = vlaneseq
    %v268 = vshrl.u32 %v267, 7
    %v269 = vsub.s32 0, %v268
    %v270 = vrot.slane %v265, %v269
    %vm272 = vcmask 261120
    %v274 = vsel %vm272, %v260, 0
    %276 = vmatprep.subr.mxu0 0.0
    %277 = vmatpush1.msra.mxu0 %v261
    %278 = vmatprep.subr.mxu0 0.0
    %279 = vmatpush1.msra.mxu0 %v262
    %280 = vmatprep.subr.mxu0 0.0
    %281 = vmatpush1.msra.mxu0 %v263
    %282 = vmatprep.subr.mxu0 0.0
    %283 = vmatpush1.msra.mxu0 %v264
    %284 = vmatprep.subr.mxu0 0.0
    %285 = vmatpush1.msra.mxu0 0.0
    %286 = vmatprep.subr.mxu0 0.0
    %287 = vmatpush1.msra.mxu0 0.0
    %288 = vmatprep.subr.mxu0 0.0
    %289 = vmatpush1.msra.mxu0 0.0
    %290 = vmatprep.subr.mxu0 0.0
    %291 = vmatpush1.msra.mxu0 0.0
    %292 = vmatprep.subr.mxu0 0.0
    %293 = vmatpush1.msra.mxu0 0.0
    %294 = vmatprep.subr.mxu0 0.0
    %295 = vmatpush1.msra.mxu0 0.0
    %296 = vmatprep.subr.mxu0 0.0
    %297 = vmatpush1.msra.mxu0 0.0
    %298 = vmatprep.subr.mxu0 0.0
    %299 = vmatpush1.msra.mxu0 0.0
    %300 = vmatprep.subr.mxu0 0.0
    %301 = vmatpush1.msra.mxu0 0.0
    %302 = vmatprep.subr.mxu0 0.0
    %303 = vmatpush1.msra.mxu0 0.0
    %304 = vmatprep.subr.mxu0 0.0
    %305 = vmatpush1.msra.mxu0 0.0
    %306 = vmatprep.subr.mxu0 0.0
    %307 = vmatpush1.msra.mxu0 0.0
    %308 = vmatprep.subr.mxu0 0.0
    %309 = vmatpush1.msra.mxu0 0.0
    %310 = vmatprep.subr.mxu0 0.0
    %311 = vmatpush1.msra.mxu0 0.0
    %312 = vmatprep.subr.mxu0 0.0
    %313 = vmatpush1.msra.mxu0 0.0
    %314 = vmatprep.subr.mxu0 0.0
    %315 = vmatpush1.msra.mxu0 0.0
    %316 = vmatprep.subr.mxu0 0.0
    %317 = vmatpush1.msra.mxu0 0.0
    %318 = vmatprep.subr.mxu0 0.0
    %319 = vmatpush1.msra.mxu0 0.0
    %320 = vmatprep.subr.mxu0 0.0
    %321 = vmatpush1.msra.mxu0 0.0
    %322 = vmatprep.subr.mxu0 0.0
    %323 = vmatpush1.msra.mxu0 0.0
    %324 = vmatprep.subr.mxu0 0.0
    %325 = vmatpush1.msra.mxu0 0.0
    %326 = vmatprep.subr.mxu0 0.0
    %327 = vmatpush1.msra.mxu0 0.0
    %328 = vmatprep.subr.mxu0 0.0
    %329 = vmatpush1.msra.mxu0 0.0
    %330 = vmatprep.subr.mxu0 0.0
    %331 = vmatpush1.msra.mxu0 0.0
    %332 = vmatprep.subr.mxu0 0.0
    %333 = vmatpush1.msra.mxu0 0.0
    %334 = vmatprep.subr.mxu0 0.0
    %335 = vmatpush1.msra.mxu0 0.0
    %336 = vmatprep.subr.mxu0 0.0
    %337 = vmatpush1.msra.mxu0 0.0
    %338 = vmatprep.subr.mxu0 0.0
    %339 = vmatpush1.msra.mxu0 0.0
    %340 = vmatprep.mubr.f32.mxu0 0.0
    %341 = vmatmul.mubr.f32.gmra.mrb[0].mxu0 %v274
    %v342 = vpop.f32.mrb[0].mxu0
    %v343 = vadd.f32 %v270, %v342
    %v344 = vpop.f32.mrb[0].mxu0
    %345 = vdwg.mxu0
    %v346 = vmul.f32 %v343, 0.01
    %v347 = vmax.f32 %v343, %v346
    %v348 = vadd.f32 %v260, %v347
    %s349 = scalar_lea.vmem [#allocation11], 32
    %v350 = vld [vmem:[%s349] sm:$0xff]
    %v351 = vld [vmem:[%s349 + $0x8] sm:$0xff]
    %v352 = vld [vmem:[%s349 + $0x10] sm:$0xff]
    %v353 = vld [vmem:[%s349 + $0x18] sm:$0xff]
    %s354 = scalar_lea.vmem %s6, 1
    %v355 = vld [vmem:[%s354] sm:$0x1]
    %v357 = vlaneseq
    %v358 = vshrl.u32 %v357, 7
    %v359 = vsub.s32 0, %v358
    %v360 = vrot.slane %v355, %v359
    %v363 = vsel %vm272, %v348, 0
    %365 = vmatprep.subr.mxu0 0.0
    %366 = vmatpush1.msra.mxu0 %v350
    %367 = vmatprep.subr.mxu0 0.0
    %368 = vmatpush1.msra.mxu0 %v351
    %369 = vmatprep.subr.mxu0 0.0
    %370 = vmatpush1.msra.mxu0 %v352
    %371 = vmatprep.subr.mxu0 0.0
    %372 = vmatpush1.msra.mxu0 %v353
    %373 = vmatprep.subr.mxu0 0.0
    %374 = vmatpush1.msra.mxu0 0.0
    %375 = vmatprep.subr.mxu0 0.0
    %376 = vmatpush1.msra.mxu0 0.0
    %377 = vmatprep.subr.mxu0 0.0
    %378 = vmatpush1.msra.mxu0 0.0
    %379 = vmatprep.subr.mxu0 0.0
    %380 = vmatpush1.msra.mxu0 0.0
    %381 = vmatprep.subr.mxu0 0.0
    %382 = vmatpush1.msra.mxu0 0.0
    %383 = vmatprep.subr.mxu0 0.0
    %384 = vmatpush1.msra.mxu0 0.0
    %385 = vmatprep.subr.mxu0 0.0
    %386 = vmatpush1.msra.mxu0 0.0
    %387 = vmatprep.subr.mxu0 0.0
    %388 = vmatpush1.msra.mxu0 0.0
    %389 = vmatprep.subr.mxu0 0.0
    %390 = vmatpush1.msra.mxu0 0.0
    %391 = vmatprep.subr.mxu0 0.0
    %392 = vmatpush1.msra.mxu0 0.0
    %393 = vmatprep.subr.mxu0 0.0
    %394 = vmatpush1.msra.mxu0 0.0
    %395 = vmatprep.subr.mxu0 0.0
    %396 = vmatpush1.msra.mxu0 0.0
    %397 = vmatprep.subr.mxu0 0.0
    %398 = vmatpush1.msra.mxu0 0.0
    %399 = vmatprep.subr.mxu0 0.0
    %400 = vmatpush1.msra.mxu0 0.0
    %401 = vmatprep.subr.mxu0 0.0
    %402 = vmatpush1.msra.mxu0 0.0
    %403 = vmatprep.subr.mxu0 0.0
    %404 = vmatpush1.msra.mxu0 0.0
    %405 = vmatprep.subr.mxu0 0.0
    %406 = vmatpush1.msra.mxu0 0.0
    %407 = vmatprep.subr.mxu0 0.0
    %408 = vmatpush1.msra.mxu0 0.0
    %409 = vmatprep.subr.mxu0 0.0
    %410 = vmatpush1.msra.mxu0 0.0
    %411 = vmatprep.subr.mxu0 0.0
    %412 = vmatpush1.msra.mxu0 0.0
    %413 = vmatprep.subr.mxu0 0.0
    %414 = vmatpush1.msra.mxu0 0.0
    %415 = vmatprep.subr.mxu0 0.0
    %416 = vmatpush1.msra.mxu0 0.0
    %417 = vmatprep.subr.mxu0 0.0
    %418 = vmatpush1.msra.mxu0 0.0
    %419 = vmatprep.subr.mxu0 0.0
    %420 = vmatpush1.msra.mxu0 0.0
    %421 = vmatprep.subr.mxu0 0.0
    %422 = vmatpush1.msra.mxu0 0.0
    %423 = vmatprep.subr.mxu0 0.0
    %424 = vmatpush1.msra.mxu0 0.0
    %425 = vmatprep.subr.mxu0 0.0
    %426 = vmatpush1.msra.mxu0 0.0
    %427 = vmatprep.subr.mxu0 0.0
    %428 = vmatpush1.msra.mxu0 0.0
    %429 = vmatprep.mubr.f32.mxu0 0.0
    %430 = vmatmul.mubr.f32.gmra.mrb[0].mxu0 %v363
    %v431 = vpop.f32.mrb[0].mxu0
    %v432 = vadd.f32 %v360, %v431
    %v433 = vpop.f32.mrb[0].mxu0
    %434 = vdwg.mxu0
    %v435 = vmul.f32 %v432, 0.01
    %v436 = vmax.f32 %v432, %v435
    %v437 = vadd.f32 %v348, %v436
    %s438 = scalar_lea.vmem [#allocation11], 64
    %v439 = vld [vmem:[%s438] sm:$0xff]
    %v440 = vld [vmem:[%s438 + $0x8] sm:$0xff]
    %v441 = vld [vmem:[%s438 + $0x10] sm:$0xff]
    %v442 = vld [vmem:[%s438 + $0x18] sm:$0xff]
    %s443 = scalar_lea.vmem %s6, 2
    %v444 = vld [vmem:[%s443] sm:$0x1]
    %v446 = vlaneseq
    %v447 = vshrl.u32 %v446, 7
    %v448 = vsub.s32 0, %v447
    %v449 = vrot.slane %v444, %v448
    %v452 = vsel %vm272, %v437, 0
    %454 = vmatprep.subr.mxu0 0.0
    %455 = vmatpush1.msra.mxu0 %v439
    %456 = vmatprep.subr.mxu0 0.0
    %457 = vmatpush1.msra.mxu0 %v440
    %458 = vmatprep.subr.mxu0 0.0
    %459 = vmatpush1.msra.mxu0 %v441
    %460 = vmatprep.subr.mxu0 0.0
    %461 = vmatpush1.msra.mxu0 %v442
    %462 = vmatprep.subr.mxu0 0.0
    %463 = vmatpush1.msra.mxu0 0.0
    %464 = vmatprep.subr.mxu0 0.0
    %465 = vmatpush1.msra.mxu0 0.0
    %466 = vmatprep.subr.mxu0 0.0
    %467 = vmatpush1.msra.mxu0 0.0
    %468 = vmatprep.subr.mxu0 0.0
    %469 = vmatpush1.msra.mxu0 0.0
    %470 = vmatprep.subr.mxu0 0.0
    %471 = vmatpush1.msra.mxu0 0.0
    %472 = vmatprep.subr.mxu0 0.0
    %473 = vmatpush1.msra.mxu0 0.0
    %474 = vmatprep.subr.mxu0 0.0
    %475 = vmatpush1.msra.mxu0 0.0
    %476 = vmatprep.subr.mxu0 0.0
    %477 = vmatpush1.msra.mxu0 0.0
    %478 = vmatprep.subr.mxu0 0.0
    %479 = vmatpush1.msra.mxu0 0.0
    %480 = vmatprep.subr.mxu0 0.0
    %481 = vmatpush1.msra.mxu0 0.0
    %482 = vmatprep.subr.mxu0 0.0
    %483 = vmatpush1.msra.mxu0 0.0
    %484 = vmatprep.subr.mxu0 0.0
    %485 = vmatpush1.msra.mxu0 0.0
    %486 = vmatprep.subr.mxu0 0.0
    %487 = vmatpush1.msra.mxu0 0.0
    %488 = vmatprep.subr.mxu0 0.0
    %489 = vmatpush1.msra.mxu0 0.0
    %490 = vmatprep.subr.mxu0 0.0
    %491 = vmatpush1.msra.mxu0 0.0
    %492 = vmatprep.subr.mxu0 0.0
    %493 = vmatpush1.msra.mxu0 0.0
    %494 = vmatprep.subr.mxu0 0.0
    %495 = vmatpush1.msra.mxu0 0.0
    %496 = vmatprep.subr.mxu0 0.0
    %497 = vmatpush1.msra.mxu0 0.0
    %498 = vmatprep.subr.mxu0 0.0
    %499 = vmatpush1.msra.mxu0 0.0
    %500 = vmatprep.subr.mxu0 0.0
    %501 = vmatpush1.msra.mxu0 0.0
    %502 = vmatprep.subr.mxu0 0.0
    %503 = vmatpush1.msra.mxu0 0.0
    %504 = vmatprep.subr.mxu0 0.0
    %505 = vmatpush1.msra.mxu0 0.0
    %506 = vmatprep.subr.mxu0 0.0
    %507 = vmatpush1.msra.mxu0 0.0
    %508 = vmatprep.subr.mxu0 0.0
    %509 = vmatpush1.msra.mxu0 0.0
    %510 = vmatprep.subr.mxu0 0.0
    %511 = vmatpush1.msra.mxu0 0.0
    %512 = vmatprep.subr.mxu0 0.0
    %513 = vmatpush1.msra.mxu0 0.0
    %514 = vmatprep.subr.mxu0 0.0
    %515 = vmatpush1.msra.mxu0 0.0
    %516 = vmatprep.subr.mxu0 0.0
    %517 = vmatpush1.msra.mxu0 0.0
    %518 = vmatprep.mubr.f32.mxu0 0.0
    %519 = vmatmul.mubr.f32.gmra.mrb[0].mxu0 %v452
    %v520 = vpop.f32.mrb[0].mxu0
    %v521 = vadd.f32 %v449, %v520
    %v522 = vpop.f32.mrb[0].mxu0
    %523 = vdwg.mxu0
    %v524 = vmul.f32 %v521, 0.01
    %v525 = vmax.f32 %v521, %v524
    %v526 = vadd.f32 %v437, %v525
    %v527 = vld [vmem:[%s7] sm:$0x1]
    %s528 = sld [smem:[#allocation2]]
    %v529 = vstv %s528
    %v531 = vsel %vm272, %v527, 0
    %v534 = vsel %vm272, %v526, 0
    %536 = vmatprep.subr.mxu0 0.0
    %537 = vmatpush1.xpose.msra.mxu0 %v534
    %538 = vmatprep.subr.mxu0 0.0
    %539 = vmatpush1.xpose.msra.mxu0 0.0
    %540 = vmatprep.subr.mxu0 0.0
    %541 = vmatpush1.xpose.msra.mxu0 0.0
    %542 = vmatprep.subr.mxu0 0.0
    %543 = vmatpush1.xpose.msra.mxu0 0.0
    %544 = vmatprep.subr.mxu0 0.0
    %545 = vmatpush1.xpose.msra.mxu0 0.0
    %546 = vmatprep.subr.mxu0 0.0
    %547 = vmatpush1.xpose.msra.mxu0 0.0
    %548 = vmatprep.subr.mxu0 0.0
    %549 = vmatpush1.xpose.msra.mxu0 0.0
    %550 = vmatprep.subr.mxu0 0.0
    %551 = vmatpush1.xpose.msra.mxu0 0.0
    %552 = vmatprep.subr.mxu0 0.0
    %553 = vmatpush1.xpose.msra.mxu0 0.0
    %554 = vmatprep.subr.mxu0 0.0
    %555 = vmatpush1.xpose.msra.mxu0 0.0
    %556 = vmatprep.subr.mxu0 0.0
    %557 = vmatpush1.xpose.msra.mxu0 0.0
    %558 = vmatprep.subr.mxu0 0.0
    %559 = vmatpush1.xpose.msra.mxu0 0.0
    %560 = vmatprep.subr.mxu0 0.0
    %561 = vmatpush1.xpose.msra.mxu0 0.0
    %562 = vmatprep.subr.mxu0 0.0
    %563 = vmatpush1.xpose.msra.mxu0 0.0
    %564 = vmatprep.subr.mxu0 0.0
    %565 = vmatpush1.xpose.msra.mxu0 0.0
    %566 = vmatprep.subr.mxu0 0.0
    %567 = vmatpush1.xpose.msra.mxu0 0.0
    %568 = vmatprep.subr.mxu0 0.0
    %569 = vmatpush1.xpose.msra.mxu0 0.0
    %570 = vmatprep.subr.mxu0 0.0
    %571 = vmatpush1.xpose.msra.mxu0 0.0
    %572 = vmatprep.subr.mxu0 0.0
    %573 = vmatpush1.xpose.msra.mxu0 0.0
    %574 = vmatprep.subr.mxu0 0.0
    %575 = vmatpush1.xpose.msra.mxu0 0.0
    %576 = vmatprep.subr.mxu0 0.0
    %577 = vmatpush1.xpose.msra.mxu0 0.0
    %578 = vmatprep.subr.mxu0 0.0
    %579 = vmatpush1.xpose.msra.mxu0 0.0
    %580 = vmatprep.subr.mxu0 0.0
    %581 = vmatpush1.xpose.msra.mxu0 0.0
    %582 = vmatprep.subr.mxu0 0.0
    %583 = vmatpush1.xpose.msra.mxu0 0.0
    %584 = vmatprep.subr.mxu0 0.0
    %585 = vmatpush1.xpose.msra.mxu0 0.0
    %586 = vmatprep.subr.mxu0 0.0
    %587 = vmatpush1.xpose.msra.mxu0 0.0
    %588 = vmatprep.subr.mxu0 0.0
    %589 = vmatpush1.xpose.msra.mxu0 0.0
    %590 = vmatprep.subr.mxu0 0.0
    %591 = vmatpush1.xpose.msra.mxu0 0.0
    %592 = vmatprep.subr.mxu0 0.0
    %593 = vmatpush1.xpose.msra.mxu0 0.0
    %594 = vmatprep.subr.mxu0 0.0
    %595 = vmatpush1.xpose.msra.mxu0 0.0
    %596 = vmatprep.subr.mxu0 0.0
    %597 = vmatpush1.xpose.msra.mxu0 0.0
    %598 = vmatprep.subr.mxu0 0.0
    %599 = vmatpush1.xpose.msra.mxu0 0.0
    %600 = vmatprep.mubr.f32.mxu0 0.0
    %601 = vmatmul.mubr.f32.gmra.mrb[0].mxu0 %v531
    %v602 = vpop.f32.mrb[0].mxu0
    %v603 = vadd.f32 %v529, %v602
    %v604 = vpop.f32.mrb[0].mxu0
    %605 = vdwg.mxu0
    %vm606 = vcmask 57344
    %607 = vst.msk [vmem:[#allocation12] sm:$0x1] %vm606, %v603
    // Predicated region
    $region58: #{tpu_custom_call.1} parent=1 // pred_check
      _
    $region59: #{tpu_custom_call.1} parent=1 // pred_check_branch
      %609 = sbr.rel (0) target = $region61
    $region60: #{tpu_custom_call.1} parent=1 // pred_region
      %s611 = ssub.s32 16, 16
      %612 = vsyncadd [#allocation5], %s611
      %s614 = sshll.u32 [#allocation12], 4
      %s615 = int_to_ptr.vmem [resolvable:$true] %s614
      %617 = dma.vmem_to_hbm [thread:$0]  %s615, 16, %s9, [#allocation5]
    $region61: #{tpu_custom_call.1} parent=1 // pred_fallthru
      _
    // Predicated region
    $region62: #{tpu_custom_call.1} parent=1 // pred_check
      _
    $region63: #{tpu_custom_call.1} parent=1 // pred_check_branch
      %619 = sbr.rel (0) target = $region65
    $region64: #{tpu_custom_call.1} parent=1 // pred_region
      %620 = dma.done [#allocation5], 16
    $region65: #{tpu_custom_call.1} parent=1 // pred_fallthru
      _
    %621 = vsyncpa [#allocation4], 1
    %622 = vsyncpa [#allocation7], 1
    %623 = vsyncpa [#allocation10], 1
    %624 = vsyncpa [#allocation5], 1

</llo_original>
